<compile_context>
chip_gen: v6e
topology: v6e:2x2x1
jax: 0.10.0
libtpu: 0.0.40
codegen_flags: <defaults>
</compile_context>

<pallas_src>
import functools

import jax
import jax.numpy as jnp
from jax.experimental import pallas as pl
from jax.experimental.pallas import tpu as pltpu

LANE = 128  # on-chip padded feature width (full 128-lane MXU tiles)


def _round_up(v, m):
    return ((v + m - 1) // m) * m


def _min_sublane(dtype):
    # minimum second-to-last tile dim: 8 (f32), 16 (bf16), 32 (int8/fp8)
    return max(8, 32 // jnp.dtype(dtype).itemsize)


def _fused_sequence_kernel(x_ref, w_ref, b_ref, *out_refs,
                           relu_flags, in_dim, out_dims, compute_dtype):
    """All Sequence steps fused: h_{i+1} = act_i(h_i @ W_i + b_i).

    x_ref : (tm, in_dim)            activation tile (natural width)
    w_ref : (n_steps, 128, 128)     packed, zero-padded weights (stationary)
    b_ref : (n_steps, 1, 128)       packed, zero-padded f32 biases (stationary)
    out_refs[i] : (tm, out_dims[i]) true-width per-step outputs
    Intermediates live on-chip as 128-lane padded f32 accumulators.
    """
    n_steps = len(out_refs)
    h = x_ref[...].astype(compute_dtype)          # cast on-chip (VPU, free)
    k = in_dim
    for i in range(n_steps):
        w = w_ref[i] if k == LANE else w_ref[i, :k, :]
        acc = jnp.dot(h, w, preferred_element_type=jnp.float32)   # (tm, 128)
        acc = acc + b_ref[i]                       # f32 bias-add, (1,128) bcast
        if relu_flags[i]:
            acc = jnp.maximum(acc, 0.0)
        out_refs[i][...] = acc[:, :out_dims[i]].astype(out_refs[i].dtype)
        h = acc.astype(compute_dtype)              # padded lanes stay exactly 0
        k = LANE


def sequence_forward(x, params, *, block_m=512,
                     compute_dtype=jnp.bfloat16, out_dtype=None):
    """Mirrors Sequence.forward: returns [x, step0(x), step1(step0(x)), ...]."""
    B, in_dim = x.shape
    n_steps = len(params)
    relu_flags = tuple(bool(r) for (_, _, r) in params)
    out_dims = tuple(w.shape[1] for (w, _, _) in params)
    if out_dtype is None:
        out_dtype = x.dtype
    assert in_dim <= LANE and all(d <= LANE for d in out_dims)
    assert all(w.shape[0] <= LANE for (w, _, _) in params)

    # ---- batch tiling -------------------------------------------------
    min_tile = max(_min_sublane(x.dtype), _min_sublane(out_dtype))
    tm = min(block_m, _round_up(B, min_tile))
    tm = max(min_tile, (tm // min_tile) * min_tile)
    b_pad = _round_up(B, tm)
    # v7x megacore: prefer >= 2 grid programs so both TensorCores get work.
    if b_pad // tm < 2 and tm >= 2 * min_tile:
        tm = _round_up(tm // 2, min_tile)
        b_pad = _round_up(B, tm)

    x_in = jnp.pad(x, ((0, b_pad - B), (0, 0))) if b_pad != B else x

    # ---- pack parameters (zero-padded to 128 lanes; padding is exact) --
    w_packed = jnp.stack(
        [jnp.pad(w, ((0, LANE - w.shape[0]), (0, LANE - w.shape[1])))
         for (w, _, _) in params]).astype(compute_dtype)          # (S,128,128)
    b_packed = jnp.stack(
        [jnp.pad(b.reshape(1, -1), ((0, 0), (0, LANE - b.size)))
         for (_, b, _) in params]).astype(jnp.float32)            # (S,1,128)

    kernel = functools.partial(
        _fused_sequence_kernel,
        relu_flags=relu_flags, in_dim=in_dim, out_dims=out_dims,
        compute_dtype=compute_dtype)

    outs = pl.pallas_call(
        kernel,
        out_shape=tuple(jax.ShapeDtypeStruct((b_pad, d), out_dtype)
                        for d in out_dims),
        grid=(b_pad // tm,),
        in_specs=[
            pl.BlockSpec((tm, in_dim), lambda i: (i, 0)),            # x tile
            pl.BlockSpec((n_steps, LANE, LANE), lambda i: (0, 0, 0)),  # weights
            pl.BlockSpec((n_steps, 1, LANE), lambda i: (0, 0, 0)),     # biases
        ],
        out_specs=tuple(pl.BlockSpec((tm, d), lambda i: (i, 0))
                        for d in out_dims),
        compiler_params=pltpu.CompilerParams(
            dimension_semantics=("parallel",),        # megacore-sharded on v7x
            vmem_limit_bytes=32 * 1024 * 1024),       # safe on v7x 64 MiB VMEM
    )(x_in, w_packed, b_packed)

    ret = [x]
    for o in outs:
        ret.append(o[:B] if b_pad != B else o)
    return ret


def init_params(key, feature_sizes, relu_flags):
    """Deterministic parameter init for the chain of Linear steps."""
    params = []
    for i, (fan_in, fan_out) in enumerate(
        zip(feature_sizes[:-1], feature_sizes[1:])
    ):
        kw, kb, key = jax.random.split(key, 3)
        scale = 1.0 / jnp.sqrt(jnp.float32(fan_in))
        w = jax.random.uniform(
            kw, (fan_in, fan_out), jnp.float32, minval=-scale, maxval=scale)
        b = jax.random.uniform(
            kb, (1, fan_out), jnp.float32, minval=-scale, maxval=scale)
        params.append((w, b, relu_flags[i]))
    return params


if __name__ == "__main__":
    key = jax.random.PRNGKey(0)
    kx, kp = jax.random.split(key)

    batch = 8
    feature_sizes = [32, 64, 128, 32]   # Linear(32->64), (64->128), (128->32)
    relu_flags = [True, True, False]

    x = jax.random.normal(kx, (batch, feature_sizes[0]), jnp.float32)
    params = init_params(kp, feature_sizes, relu_flags)

    # Pure-JAX reference of the same chain (Sequence.forward semantics).
    ref = [x]
    h = x
    for (w, b, relu) in params:
        h = h @ w + b
        if relu:
            h = jnp.maximum(h, 0.0)
        ref.append(h)

    # Exact path (f32 operands) — tight check.
    outs_f32 = jax.block_until_ready(
        sequence_forward(x, params, compute_dtype=jnp.float32))
    assert len(outs_f32) == len(ref) == len(params) + 1
    for o, r in zip(outs_f32, ref):
        assert o.shape == r.shape and o.dtype == r.dtype
        assert jnp.allclose(o, r, atol=1e-5, rtol=1e-5)

    # Default fast path (bf16 MXU operands, f32 accumulation) — loose check.
    outs_bf16 = jax.block_until_ready(sequence_forward(x, params))
    for o, r in zip(outs_bf16, ref):
        assert o.shape == r.shape and o.dtype == r.dtype
        assert jnp.allclose(o, r, atol=5e-2, rtol=5e-2)

    print("KERNEL_OK")
</pallas_src>

<mosaic_0001>
module attributes {stable_mosaic.version = 11 : i64} {
  func.func @_fused_sequence_kernel(%arg0: i32, %arg1: memref<8x32xf32, #tpu.memory_space<vmem>>, %arg2: memref<3x128x128xf32, #tpu.memory_space<vmem>>, %arg3: memref<3x1x128xf32, #tpu.memory_space<vmem>>, %arg4: memref<8x64xf32, #tpu.memory_space<vmem>>, %arg5: memref<8x128xf32, #tpu.memory_space<vmem>>, %arg6: memref<8x32xf32, #tpu.memory_space<vmem>>) attributes {dimension_semantics = [#tpu.dimension_semantics<parallel>], iteration_bounds = array<i64: 1>, scalar_prefetch = 0 : i64, scratch_operands = 0 : i64, tpu.core_type = #tpu.core_type<tc>, window_params = [{transform_indices = @transform_0, window_bounds = array<i64: 8, 32>}, {pipeline_mode = #tpu.pipeline_mode<synchronous>, transform_indices = @transform_1, window_bounds = array<i64: 3, 128, 128>}, {pipeline_mode = #tpu.pipeline_mode<synchronous>, transform_indices = @transform_2, window_bounds = array<i64: 3, 1, 128>}, {transform_indices = @transform_3, window_bounds = array<i64: 8, 64>}, {transform_indices = @transform_4, window_bounds = array<i64: 8, 128>}, {transform_indices = @transform_5, window_bounds = array<i64: 8, 32>}]} {
    %c0 = arith.constant 0 : index
    %c0_0 = arith.constant 0 : index
    %0 = vector.load %arg1[%c0, %c0_0] : memref<8x32xf32, #tpu.memory_space<vmem>>, vector<8x32xf32>
    %c0_1 = arith.constant 0 : index
    %c0_2 = arith.constant 0 : index
    %c0_3 = arith.constant 0 : index
    %1 = vector.load %arg2[%c0_1, %c0_2, %c0_3] : memref<3x128x128xf32, #tpu.memory_space<vmem>>, vector<1x32x128xf32>
    %2 = vector.shape_cast %1 : vector<1x32x128xf32> to vector<32x128xf32>
    %cst = arith.constant dense<0.000000e+00> : vector<8x128xf32>
    %3 = tpu.matmul %0, %2, %cst {dimension_numbers = #tpu.dot_dimension_numbers<[1], [0], [0], [1], [0, 0, 1, 1], [], []>} : vector<8x32xf32>, vector<32x128xf32>, vector<8x128xf32> -> vector<8x128xf32>
    %c0_4 = arith.constant 0 : index
    %c0_5 = arith.constant 0 : index
    %c0_6 = arith.constant 0 : index
    %4 = vector.load %arg3[%c0_4, %c0_5, %c0_6] : memref<3x1x128xf32, #tpu.memory_space<vmem>>, vector<1x1x128xf32>
    %5 = vector.shape_cast %4 : vector<1x1x128xf32> to vector<1x128xf32>
    %6 = vector.broadcast %5 : vector<1x128xf32> to vector<8x128xf32>
    %7 = arith.addf %3, %6 : vector<8x128xf32>
    %cst_7 = arith.constant 0.000000e+00 : f32
    %8 = vector.broadcast %cst_7 : f32 to vector<8x128xf32>
    %9 = arith.maximumf %7, %8 : vector<8x128xf32>
    %10 = vector.extract_strided_slice %9 {offsets = [0, 0], sizes = [8, 64], strides = [1, 1]} : vector<8x128xf32> to vector<8x64xf32>
    %c0_8 = arith.constant 0 : index
    %c0_9 = arith.constant 0 : index
    %11 = vector.load %arg4[%c0_8, %c0_9] : memref<8x64xf32, #tpu.memory_space<vmem>>, vector<8x64xf32>
    tpu.vector_store %arg4[%c0_8, %c0_9], %10 {strides = array<i32>} : memref<8x64xf32, #tpu.memory_space<vmem>>, vector<8x64xf32>,
    %c1 = arith.constant 1 : index
    %c0_10 = arith.constant 0 : index
    %c0_11 = arith.constant 0 : index
    %12 = vector.load %arg2[%c1, %c0_10, %c0_11] : memref<3x128x128xf32, #tpu.memory_space<vmem>>, vector<1x128x128xf32>
    %13 = vector.shape_cast %12 : vector<1x128x128xf32> to vector<128x128xf32>
    %cst_12 = arith.constant dense<0.000000e+00> : vector<8x128xf32>
    %14 = tpu.matmul %9, %13, %cst_12 {dimension_numbers = #tpu.dot_dimension_numbers<[1], [0], [0], [1], [0, 0, 1, 1], [], []>} : vector<8x128xf32>, vector<128x128xf32>, vector<8x128xf32> -> vector<8x128xf32>
    %c1_13 = arith.constant 1 : index
    %c0_14 = arith.constant 0 : index
    %c0_15 = arith.constant 0 : index
    %15 = vector.load %arg3[%c1_13, %c0_14, %c0_15] : memref<3x1x128xf32, #tpu.memory_space<vmem>>, vector<1x1x128xf32>
    %16 = vector.shape_cast %15 : vector<1x1x128xf32> to vector<1x128xf32>
    %17 = vector.broadcast %16 : vector<1x128xf32> to vector<8x128xf32>
    %18 = arith.addf %14, %17 : vector<8x128xf32>
    %cst_16 = arith.constant 0.000000e+00 : f32
    %19 = vector.broadcast %cst_16 : f32 to vector<8x128xf32>
    %20 = arith.maximumf %18, %19 : vector<8x128xf32>
    %c0_17 = arith.constant 0 : index
    %c0_18 = arith.constant 0 : index
    %21 = vector.load %arg5[%c0_17, %c0_18] : memref<8x128xf32, #tpu.memory_space<vmem>>, vector<8x128xf32>
    tpu.vector_store %arg5[%c0_17, %c0_18], %20 {strides = array<i32>} : memref<8x128xf32, #tpu.memory_space<vmem>>, vector<8x128xf32>,
    %c2 = arith.constant 2 : index
    %c0_19 = arith.constant 0 : index
    %c0_20 = arith.constant 0 : index
    %22 = vector.load %arg2[%c2, %c0_19, %c0_20] : memref<3x128x128xf32, #tpu.memory_space<vmem>>, vector<1x128x128xf32>
    %23 = vector.shape_cast %22 : vector<1x128x128xf32> to vector<128x128xf32>
    %cst_21 = arith.constant dense<0.000000e+00> : vector<8x128xf32>
    %24 = tpu.matmul %20, %23, %cst_21 {dimension_numbers = #tpu.dot_dimension_numbers<[1], [0], [0], [1], [0, 0, 1, 1], [], []>} : vector<8x128xf32>, vector<128x128xf32>, vector<8x128xf32> -> vector<8x128xf32>
    %c2_22 = arith.constant 2 : index
    %c0_23 = arith.constant 0 : index
    %c0_24 = arith.constant 0 : index
    %25 = vector.load %arg3[%c2_22, %c0_23, %c0_24] : memref<3x1x128xf32, #tpu.memory_space<vmem>>, vector<1x1x128xf32>
    %26 = vector.shape_cast %25 : vector<1x1x128xf32> to vector<1x128xf32>
    %27 = vector.broadcast %26 : vector<1x128xf32> to vector<8x128xf32>
    %28 = arith.addf %24, %27 : vector<8x128xf32>
    %29 = vector.extract_strided_slice %28 {offsets = [0, 0], sizes = [8, 32], strides = [1, 1]} : vector<8x128xf32> to vector<8x32xf32>
    %c0_25 = arith.constant 0 : index
    %c0_26 = arith.constant 0 : index
    %30 = vector.load %arg6[%c0_25, %c0_26] : memref<8x32xf32, #tpu.memory_space<vmem>>, vector<8x32xf32>
    tpu.vector_store %arg6[%c0_25, %c0_26], %29 {strides = array<i32>} : memref<8x32xf32, #tpu.memory_space<vmem>>, vector<8x32xf32>,
    return
  }
  func.func @transform_0(%arg0: i32) -> (i32, i32) {
    %c0_i32 = arith.constant 0 : i32
    %c0_i32_0 = arith.constant 0 : i32
    return %arg0, %c0_i32 : i32, i32
  }
  func.func @transform_1(%arg0: i32) -> (i32, i32, i32) {
    %c0_i32 = arith.constant 0 : i32
    %c0_i32_0 = arith.constant 0 : i32
    %c0_i32_1 = arith.constant 0 : i32
    %c0_i32_2 = arith.constant 0 : i32
    return %c0_i32, %c0_i32_0, %c0_i32_1 : i32, i32, i32
  }
  func.func @transform_2(%arg0: i32) -> (i32, i32, i32) {
    %c0_i32 = arith.constant 0 : i32
    %c0_i32_0 = arith.constant 0 : i32
    %c0_i32_1 = arith.constant 0 : i32
    %c0_i32_2 = arith.constant 0 : i32
    return %c0_i32, %c0_i32_0, %c0_i32_1 : i32, i32, i32
  }
  func.func @transform_3(%arg0: i32) -> (i32, i32) {
    %c0_i32 = arith.constant 0 : i32
    %c0_i32_0 = arith.constant 0 : i32
    return %arg0, %c0_i32 : i32, i32
  }
  func.func @transform_4(%arg0: i32) -> (i32, i32) {
    %c0_i32 = arith.constant 0 : i32
    %c0_i32_0 = arith.constant 0 : i32
    return %arg0, %c0_i32 : i32, i32
  }
  func.func @transform_5(%arg0: i32) -> (i32, i32) {
    %c0_i32 = arith.constant 0 : i32
    %c0_i32_0 = arith.constant 0 : i32
    return %arg0, %c0_i32 : i32, i32
  }
}

</mosaic_0001>

<llo_original>
// kernel: tpu_custom_call.1
$region0: #{tpu_custom_call.1}
  #allocation0 [shape = 'u32[]', space=smem, size = 0x4, offset = 0x4, fixed_abs, tag = 'smem constant byte address 0x4 - core index']
  #allocation1 [shape = 'u32[144,128]{1,0:T(1,128)}', space=vmem, size = 0x12000, scoped, tag = 'internal scratch']
  %s0 = inlined_call_operand.hbm [shape: f32[8,32], index: 0, kind: input, shape index: {}]
  %s1 = inlined_call_operand.hbm [shape: f32[3,128,128], index: 1, kind: input, shape index: {}]
  %s2 = inlined_call_operand.vmem [shape: f32[3,1,128], index: 2, kind: input, shape index: {}]
  %s3 = inlined_call_operand.hbm [shape: f32[8,64], index: 3, kind: output, shape index: {0}]
  %s4 = inlined_call_operand.hbm [shape: f32[8,128], index: 4, kind: output, shape index: {1}]
  %s5 = inlined_call_operand.hbm [shape: f32[8,32], index: 5, kind: output, shape index: {2}]
  %6 = xla_tuple %s3, %s4, %s5
  %s7 = sld [smem:[#allocation0]]
  $region46: #{tpu_custom_call.1} parent=0
    _
  %s9 = ssub.s32 1, %s7
  %s10 = scalar_select 0, %s9, %s7
  $region1: #{tpu_custom_call.1} parent=0
    #allocation2 [shape = 'u8[4096]{0}', space=vmem, size = 0x1000, scoped, tag = 'input window, operand 0, single buffered']
    #allocation3 [shape = 's32[1]{0}', space=sflag, size = 0x4, scoped, tag = 'scoped memory for tpu_custom_call.1']
    #allocation4 [shape = 's32[1]{0}', space=sflag, size = 0x4, scoped, tag = 'scoped memory for tpu_custom_call.1']
    #allocation5 [shape = 'u8[196608]{0}', space=vmem, size = 0x30000, scoped, tag = 'input window, operand 1, single buffered']
    #allocation6 [shape = 's32[1]{0}', space=sflag, size = 0x4, scoped, tag = 'scoped memory for tpu_custom_call.1']
    #allocation7 [shape = 'u8[4096]{0}', space=vmem, size = 0x1000, scoped, tag = 'output window, operand 0, single buffered']
    #allocation8 [shape = 'u8[4096]{0}', space=vmem, size = 0x1000, scoped, tag = 'output window, operand 1, single buffered']
    #allocation9 [shape = 's32[1]{0}', space=sflag, size = 0x4, scoped, tag = 'scoped memory for tpu_custom_call.1']
    #allocation10 [shape = 'u8[4096]{0}', space=vmem, size = 0x1000, scoped, tag = 'output window, operand 2, single buffered']
    %11 = vsyncpa [#allocation3], 0
    %12 = vsyncpa [#allocation6], 0
    %13 = vsyncpa [#allocation4], 0
    %14 = vsyncpa [#allocation9], 0
    // Predicated region
    $region2: #{tpu_custom_call.1} parent=1 // pred_check
      _
    $region3: #{tpu_custom_call.1} parent=1 // pred_check_branch
      %16 = sbr.rel (0) target = $region5
    $region4: #{tpu_custom_call.1} parent=1 // pred_region
      %s18 = ssub.s32 128, 128
      %19 = vsyncadd [#allocation3], %s18
      %s21 = sshll.u32 [#allocation2], 4
      %s22 = int_to_ptr.vmem [resolvable:$true] %s21
      %24 = dma.hbm_to_vmem [thread:$0]  %s0, 128, %s22, [#allocation3]
    $region5: #{tpu_custom_call.1} parent=1 // pred_fallthru
      _
    // Predicated region
    $region6: #{tpu_custom_call.1} parent=1 // pred_check
      _
    $region7: #{tpu_custom_call.1} parent=1 // pred_check_branch
      %26 = sbr.rel (0) target = $region9
    $region8: #{tpu_custom_call.1} parent=1 // pred_region
      %s28 = ssub.s32 6144, 6144
      %29 = vsyncadd [#allocation6], %s28
      %s30 = sshll.u32 [#allocation5], 4
      %s31 = int_to_ptr.vmem [resolvable:$true] %s30
      %36 = dma.hbm_to_vmem [thread:$0]  %s1, 6144, %s31, [#allocation6], 128, 128, 8
    $region9: #{tpu_custom_call.1} parent=1 // pred_fallthru
      _
    // Predicated region
    $region10: #{tpu_custom_call.1} parent=1 // pred_check
      _
    $region11: #{tpu_custom_call.1} parent=1 // pred_check_branch
      %38 = sbr.rel (0) target = $region13
    $region12: #{tpu_custom_call.1} parent=1 // pred_region
      _
    $region13: #{tpu_custom_call.1} parent=1 // pred_fallthru
      _
    // Predicated region
    $region14: #{tpu_custom_call.1} parent=1 // pred_check
      _
    $region15: #{tpu_custom_call.1} parent=1 // pred_check_branch
      %40 = sbr.rel (0) target = $region17
    $region16: #{tpu_custom_call.1} parent=1 // pred_region
      %41 = dma.done [#allocation3], 128
    $region17: #{tpu_custom_call.1} parent=1 // pred_fallthru
      _
    // Predicated region
    $region18: #{tpu_custom_call.1} parent=1 // pred_check
      _
    $region19: #{tpu_custom_call.1} parent=1 // pred_check_branch
      %43 = sbr.rel (0) target = $region21
    $region20: #{tpu_custom_call.1} parent=1 // pred_region
      %44 = dma.done [#allocation6], 6144
    $region21: #{tpu_custom_call.1} parent=1 // pred_fallthru
      _
    %v45 = vld [vmem:[#allocation2] sm:$0xff]
    %v46 = vld [vmem:[#allocation5] sm:$0xff]
    %v47 = vld [vmem:[#allocation5 + $0x8] sm:$0xff]
    %v48 = vld [vmem:[#allocation5 + $0x10] sm:$0xff]
    %v49 = vld [vmem:[#allocation5 + $0x18] sm:$0xff]
    %v50 = vld [vmem:[%s2] sm:$0x1]
    %v52 = vlaneseq
    %v53 = vshrl.u32 %v52, 7
    %v54 = vsub.s32 0, %v53
    %v55 = vrot.slane %v50, %v54
    %vm57 = vcmask 261120
    %v59 = vsel %vm57, %v45, 0
    %61 = vmatprep.subr.mxu0 0.0
    %62 = vmatpush1.msra.mxu0 0.0
    %63 = vmatprep.subr.mxu0 0.0
    %64 = vmatpush1.msra.mxu0 0.0
    %65 = vmatprep.subr.mxu0 0.0
    %66 = vmatpush1.msra.mxu0 0.0
    %67 = vmatprep.subr.mxu0 0.0
    %68 = vmatpush1.msra.mxu0 0.0
    %69 = vmatprep.subr.mxu0 0.0
    %70 = vmatpush1.msra.mxu0 0.0
    %71 = vmatprep.subr.mxu0 0.0
    %72 = vmatpush1.msra.mxu0 0.0
    %73 = vmatprep.subr.mxu0 0.0
    %74 = vmatpush1.msra.mxu0 0.0
    %75 = vmatprep.subr.mxu0 0.0
    %76 = vmatpush1.msra.mxu0 0.0
    %77 = vmatprep.subr.mxu0 0.0
    %78 = vmatpush1.msra.mxu0 0.0
    %79 = vmatprep.subr.mxu0 0.0
    %80 = vmatpush1.msra.mxu0 0.0
    %81 = vmatprep.subr.mxu0 0.0
    %82 = vmatpush1.msra.mxu0 0.0
    %83 = vmatprep.subr.mxu0 0.0
    %84 = vmatpush1.msra.mxu0 0.0
    %85 = vmatprep.subr.mxu0 0.0
    %86 = vmatpush1.msra.mxu0 %v49
    %87 = vmatprep.subr.mxu0 0.0
    %88 = vmatpush1.msra.mxu0 %v48
    %89 = vmatprep.subr.mxu0 0.0
    %90 = vmatpush1.msra.mxu0 %v47
    %91 = vmatprep.subr.mxu0 0.0
    %92 = vmatpush1.msra.mxu0 %v46
    %93 = vmatprep.subr.mxu0 0.0
    %94 = vmatpush2.msra.mxu0 0.0
    %95 = vmatprep.subr.mxu0 0.0
    %96 = vmatpush2.msra.mxu0 0.0
    %97 = vmatprep.subr.mxu0 0.0
    %98 = vmatpush2.msra.mxu0 0.0
    %99 = vmatprep.subr.mxu0 0.0
    %100 = vmatpush2.msra.mxu0 0.0
    %101 = vmatprep.subr.mxu0 0.0
    %102 = vmatpush2.msra.mxu0 0.0
    %103 = vmatprep.subr.mxu0 0.0
    %104 = vmatpush2.msra.mxu0 0.0
    %105 = vmatprep.subr.mxu0 0.0
    %106 = vmatpush2.msra.mxu0 0.0
    %107 = vmatprep.subr.mxu0 0.0
    %108 = vmatpush2.msra.mxu0 0.0
    %109 = vmatprep.subr.mxu0 0.0
    %110 = vmatpush2.msra.mxu0 0.0
    %111 = vmatprep.subr.mxu0 0.0
    %112 = vmatpush2.msra.mxu0 0.0
    %113 = vmatprep.subr.mxu0 0.0
    %114 = vmatpush2.msra.mxu0 0.0
    %115 = vmatprep.subr.mxu0 0.0
    %116 = vmatpush2.msra.mxu0 0.0
    %117 = vmatprep.subr.mxu0 0.0
    %118 = vmatpush2.msra.mxu0 0.0
    %119 = vmatprep.subr.mxu0 0.0
    %120 = vmatpush2.msra.mxu0 0.0
    %121 = vmatprep.subr.mxu0 0.0
    %122 = vmatpush2.msra.mxu0 0.0
    %123 = vmatprep.subr.mxu0 0.0
    %124 = vmatpush2.msra.mxu0 0.0
    %125 = vmatprep.mubr.f32.mxu0 0.0
    %126 = vmatmul.mubr.f32.gmra.mxu0 %v59
    %v127 = vpop.f32.mrf.mxu0
    %v128 = vadd.f32 %v55, %v127
    %v129 = vpop.f32.mrf.mxu0
    %130 = vdwg.mxu0
    %v131 = vmax.f32 %v128, 0.0
    %vm132 = vcmask 523264
    %133 = vst.msk [vmem:[#allocation7] sm:$0xff] %vm132, %v131
    %s134 = scalar_lea.vmem [#allocation5], 128
    %v135 = vld [vmem:[%s134] sm:$0xff]
    %v136 = vld [vmem:[%s134 + $0x8] sm:$0xff]
    %v137 = vld [vmem:[%s134 + $0x10] sm:$0xff]
    %v138 = vld [vmem:[%s134 + $0x18] sm:$0xff]
    %v139 = vld [vmem:[%s134 + $0x20] sm:$0xff]
    %v140 = vld [vmem:[%s134 + $0x28] sm:$0xff]
    %v141 = vld [vmem:[%s134 + $0x30] sm:$0xff]
    %v142 = vld [vmem:[%s134 + $0x38] sm:$0xff]
    %v143 = vld [vmem:[%s134 + $0x40] sm:$0xff]
    %v144 = vld [vmem:[%s134 + $0x48] sm:$0xff]
    %v145 = vld [vmem:[%s134 + $0x50] sm:$0xff]
    %v146 = vld [vmem:[%s134 + $0x58] sm:$0xff]
    %v147 = vld [vmem:[%s134 + $0x60] sm:$0xff]
    %v148 = vld [vmem:[%s134 + $0x68] sm:$0xff]
    %v149 = vld [vmem:[%s134 + $0x70] sm:$0xff]
    %v150 = vld [vmem:[%s134 + $0x78] sm:$0xff]
    %s151 = scalar_lea.vmem %s2, 1
    %v152 = vld [vmem:[%s151] sm:$0x1]
    %v154 = vlaneseq
    %v155 = vshrl.u32 %v154, 7
    %v156 = vsub.s32 0, %v155
    %v157 = vrot.slane %v152, %v156
    %159 = vmatprep.subr.mxu0 0.0
    %160 = vmatpush1.msra.mxu0 %v150
    %161 = vmatprep.subr.mxu0 0.0
    %162 = vmatpush1.msra.mxu0 %v149
    %163 = vmatprep.subr.mxu0 0.0
    %164 = vmatpush1.msra.mxu0 %v148
    %165 = vmatprep.subr.mxu0 0.0
    %166 = vmatpush1.msra.mxu0 %v147
    %167 = vmatprep.subr.mxu0 0.0
    %168 = vmatpush1.msra.mxu0 %v146
    %169 = vmatprep.subr.mxu0 0.0
    %170 = vmatpush1.msra.mxu0 %v145
    %171 = vmatprep.subr.mxu0 0.0
    %172 = vmatpush1.msra.mxu0 %v144
    %173 = vmatprep.subr.mxu0 0.0
    %174 = vmatpush1.msra.mxu0 %v143
    %175 = vmatprep.subr.mxu0 0.0
    %176 = vmatpush1.msra.mxu0 %v142
    %177 = vmatprep.subr.mxu0 0.0
    %178 = vmatpush1.msra.mxu0 %v141
    %179 = vmatprep.subr.mxu0 0.0
    %180 = vmatpush1.msra.mxu0 %v140
    %181 = vmatprep.subr.mxu0 0.0
    %182 = vmatpush1.msra.mxu0 %v139
    %183 = vmatprep.subr.mxu0 0.0
    %184 = vmatpush1.msra.mxu0 %v138
    %185 = vmatprep.subr.mxu0 0.0
    %186 = vmatpush1.msra.mxu0 %v137
    %187 = vmatprep.subr.mxu0 0.0
    %188 = vmatpush1.msra.mxu0 %v136
    %189 = vmatprep.subr.mxu0 0.0
    %190 = vmatpush1.msra.mxu0 %v135
    %191 = vmatprep.subr.mxu0 0.0
    %192 = vmatpush2.msra.mxu0 0.0
    %193 = vmatprep.subr.mxu0 0.0
    %194 = vmatpush2.msra.mxu0 0.0
    %195 = vmatprep.subr.mxu0 0.0
    %196 = vmatpush2.msra.mxu0 0.0
    %197 = vmatprep.subr.mxu0 0.0
    %198 = vmatpush2.msra.mxu0 0.0
    %199 = vmatprep.subr.mxu0 0.0
    %200 = vmatpush2.msra.mxu0 0.0
    %201 = vmatprep.subr.mxu0 0.0
    %202 = vmatpush2.msra.mxu0 0.0
    %203 = vmatprep.subr.mxu0 0.0
    %204 = vmatpush2.msra.mxu0 0.0
    %205 = vmatprep.subr.mxu0 0.0
    %206 = vmatpush2.msra.mxu0 0.0
    %207 = vmatprep.subr.mxu0 0.0
    %208 = vmatpush2.msra.mxu0 0.0
    %209 = vmatprep.subr.mxu0 0.0
    %210 = vmatpush2.msra.mxu0 0.0
    %211 = vmatprep.subr.mxu0 0.0
    %212 = vmatpush2.msra.mxu0 0.0
    %213 = vmatprep.subr.mxu0 0.0
    %214 = vmatpush2.msra.mxu0 0.0
    %215 = vmatprep.subr.mxu0 0.0
    %216 = vmatpush2.msra.mxu0 0.0
    %217 = vmatprep.subr.mxu0 0.0
    %218 = vmatpush2.msra.mxu0 0.0
    %219 = vmatprep.subr.mxu0 0.0
    %220 = vmatpush2.msra.mxu0 0.0
    %221 = vmatprep.subr.mxu0 0.0
    %222 = vmatpush2.msra.mxu0 0.0
    %223 = vmatprep.mubr.f32.mxu0 0.0
    %224 = vmatmul.mubr.f32.gmra.mxu0 %v131
    %v225 = vpop.f32.mrf.mxu0
    %v226 = vadd.f32 %v157, %v225
    %v227 = vpop.f32.mrf.mxu0
    %228 = vdwg.mxu0
    %v229 = vmax.f32 %v226, 0.0
    %230 = vst [vmem:[#allocation8] sm:$0xff] %v229
    %s231 = scalar_lea.vmem [#allocation5], 256
    %v232 = vld [vmem:[%s231] sm:$0xff]
    %v233 = vld [vmem:[%s231 + $0x8] sm:$0xff]
    %v234 = vld [vmem:[%s231 + $0x10] sm:$0xff]
    %v235 = vld [vmem:[%s231 + $0x18] sm:$0xff]
    %v236 = vld [vmem:[%s231 + $0x20] sm:$0xff]
    %v237 = vld [vmem:[%s231 + $0x28] sm:$0xff]
    %v238 = vld [vmem:[%s231 + $0x30] sm:$0xff]
    %v239 = vld [vmem:[%s231 + $0x38] sm:$0xff]
    %v240 = vld [vmem:[%s231 + $0x40] sm:$0xff]
    %v241 = vld [vmem:[%s231 + $0x48] sm:$0xff]
    %v242 = vld [vmem:[%s231 + $0x50] sm:$0xff]
    %v243 = vld [vmem:[%s231 + $0x58] sm:$0xff]
    %v244 = vld [vmem:[%s231 + $0x60] sm:$0xff]
    %v245 = vld [vmem:[%s231 + $0x68] sm:$0xff]
    %v246 = vld [vmem:[%s231 + $0x70] sm:$0xff]
    %v247 = vld [vmem:[%s231 + $0x78] sm:$0xff]
    %s248 = scalar_lea.vmem %s2, 2
    %v249 = vld [vmem:[%s248] sm:$0x1]
    %v251 = vlaneseq
    %v252 = vshrl.u32 %v251, 7
    %v253 = vsub.s32 0, %v252
    %v254 = vrot.slane %v249, %v253
    %256 = vmatprep.subr.mxu0 0.0
    %257 = vmatpush1.msra.mxu0 %v247
    %258 = vmatprep.subr.mxu0 0.0
    %259 = vmatpush1.msra.mxu0 %v246
    %260 = vmatprep.subr.mxu0 0.0
    %261 = vmatpush1.msra.mxu0 %v245
    %262 = vmatprep.subr.mxu0 0.0
    %263 = vmatpush1.msra.mxu0 %v244
    %264 = vmatprep.subr.mxu0 0.0
    %265 = vmatpush1.msra.mxu0 %v243
    %266 = vmatprep.subr.mxu0 0.0
    %267 = vmatpush1.msra.mxu0 %v242
    %268 = vmatprep.subr.mxu0 0.0
    %269 = vmatpush1.msra.mxu0 %v241
    %270 = vmatprep.subr.mxu0 0.0
    %271 = vmatpush1.msra.mxu0 %v240
    %272 = vmatprep.subr.mxu0 0.0
    %273 = vmatpush1.msra.mxu0 %v239
    %274 = vmatprep.subr.mxu0 0.0
    %275 = vmatpush1.msra.mxu0 %v238
    %276 = vmatprep.subr.mxu0 0.0
    %277 = vmatpush1.msra.mxu0 %v237
    %278 = vmatprep.subr.mxu0 0.0
    %279 = vmatpush1.msra.mxu0 %v236
    %280 = vmatprep.subr.mxu0 0.0
    %281 = vmatpush1.msra.mxu0 %v235
    %282 = vmatprep.subr.mxu0 0.0
    %283 = vmatpush1.msra.mxu0 %v234
    %284 = vmatprep.subr.mxu0 0.0
    %285 = vmatpush1.msra.mxu0 %v233
    %286 = vmatprep.subr.mxu0 0.0
    %287 = vmatpush1.msra.mxu0 %v232
    %288 = vmatprep.subr.mxu0 0.0
    %289 = vmatpush2.msra.mxu0 0.0
    %290 = vmatprep.subr.mxu0 0.0
    %291 = vmatpush2.msra.mxu0 0.0
    %292 = vmatprep.subr.mxu0 0.0
    %293 = vmatpush2.msra.mxu0 0.0
    %294 = vmatprep.subr.mxu0 0.0
    %295 = vmatpush2.msra.mxu0 0.0
    %296 = vmatprep.subr.mxu0 0.0
    %297 = vmatpush2.msra.mxu0 0.0
    %298 = vmatprep.subr.mxu0 0.0
    %299 = vmatpush2.msra.mxu0 0.0
    %300 = vmatprep.subr.mxu0 0.0
    %301 = vmatpush2.msra.mxu0 0.0
    %302 = vmatprep.subr.mxu0 0.0
    %303 = vmatpush2.msra.mxu0 0.0
    %304 = vmatprep.subr.mxu0 0.0
    %305 = vmatpush2.msra.mxu0 0.0
    %306 = vmatprep.subr.mxu0 0.0
    %307 = vmatpush2.msra.mxu0 0.0
    %308 = vmatprep.subr.mxu0 0.0
    %309 = vmatpush2.msra.mxu0 0.0
    %310 = vmatprep.subr.mxu0 0.0
    %311 = vmatpush2.msra.mxu0 0.0
    %312 = vmatprep.subr.mxu0 0.0
    %313 = vmatpush2.msra.mxu0 0.0
    %314 = vmatprep.subr.mxu0 0.0
    %315 = vmatpush2.msra.mxu0 0.0
    %316 = vmatprep.subr.mxu0 0.0
    %317 = vmatpush2.msra.mxu0 0.0
    %318 = vmatprep.subr.mxu0 0.0
    %319 = vmatpush2.msra.mxu0 0.0
    %320 = vmatprep.mubr.f32.mxu0 0.0
    %321 = vmatmul.mubr.f32.gmra.mxu0 %v229
    %v322 = vpop.f32.mrf.mxu0
    %v323 = vadd.f32 %v254, %v322
    %v324 = vpop.f32.mrf.mxu0
    %325 = vdwg.mxu0
    %326 = vst.msk [vmem:[#allocation10] sm:$0xff] %vm57, %v323
    // Predicated region
    $region22: #{tpu_custom_call.1} parent=1 // pred_check
      _
    $region23: #{tpu_custom_call.1} parent=1 // pred_check_branch
      %328 = sbr.rel (0) target = $region25
    $region24: #{tpu_custom_call.1} parent=1 // pred_region
      %s330 = ssub.s32 128, 128
      %331 = vsyncadd [#allocation4], %s330
      %s333 = sshll.u32 [#allocation7], 4
      %s334 = int_to_ptr.vmem [resolvable:$true] %s333
      %336 = dma.vmem_to_hbm [thread:$0]  %s334, 128, %s3, [#allocation4]
    $region25: #{tpu_custom_call.1} parent=1 // pred_fallthru
      _
    // Predicated region
    $region26: #{tpu_custom_call.1} parent=1 // pred_check
      _
    $region27: #{tpu_custom_call.1} parent=1 // pred_check_branch
      %338 = sbr.rel (0) target = $region29
    $region28: #{tpu_custom_call.1} parent=1 // pred_region
      %s340 = ssub.s32 128, 128
      %341 = vsyncadd [#allocation9], %s340
      %s343 = sshll.u32 [#allocation8], 4
      %s344 = int_to_ptr.vmem [resolvable:$true] %s343
      %346 = dma.vmem_to_hbm [thread:$0]  %s344, 128, %s4, [#allocation9]
    $region29: #{tpu_custom_call.1} parent=1 // pred_fallthru
      _
    // Predicated region
    $region30: #{tpu_custom_call.1} parent=1 // pred_check
      _
    $region31: #{tpu_custom_call.1} parent=1 // pred_check_branch
      %348 = sbr.rel (0) target = $region33
    $region32: #{tpu_custom_call.1} parent=1 // pred_region
      %s350 = ssub.s32 128, 128
      %351 = vsyncadd [#allocation9], %s350
      %s353 = sshll.u32 [#allocation10], 4
      %s354 = int_to_ptr.vmem [resolvable:$true] %s353
      %356 = dma.vmem_to_hbm [thread:$0]  %s354, 128, %s5, [#allocation9]
    $region33: #{tpu_custom_call.1} parent=1 // pred_fallthru
      _
    // Predicated region
    $region34: #{tpu_custom_call.1} parent=1 // pred_check
      _
    $region35: #{tpu_custom_call.1} parent=1 // pred_check_branch
      %358 = sbr.rel (0) target = $region37
    $region36: #{tpu_custom_call.1} parent=1 // pred_region
      %359 = dma.done [#allocation4], 128
    $region37: #{tpu_custom_call.1} parent=1 // pred_fallthru
      _
    // Predicated region
    $region38: #{tpu_custom_call.1} parent=1 // pred_check
      _
    $region39: #{tpu_custom_call.1} parent=1 // pred_check_branch
      %361 = sbr.rel (0) target = $region41
    $region40: #{tpu_custom_call.1} parent=1 // pred_region
      %362 = dma.done [#allocation9], 128
    $region41: #{tpu_custom_call.1} parent=1 // pred_fallthru
      _
    // Predicated region
    $region42: #{tpu_custom_call.1} parent=1 // pred_check
      _
    $region43: #{tpu_custom_call.1} parent=1 // pred_check_branch
      %364 = sbr.rel (0) target = $region45
    $region44: #{tpu_custom_call.1} parent=1 // pred_region
      %365 = dma.done [#allocation9], 128
    $region45: #{tpu_custom_call.1} parent=1 // pred_fallthru
      _
    %366 = vsyncpa [#allocation3], 1
    %367 = vsyncpa [#allocation6], 1
    %368 = vsyncpa [#allocation4], 1
    %369 = vsyncpa [#allocation9], 1

</llo_original>
